<compile_context>
chip_gen: v7x
topology: tpu7x:2x2x1
jax: 0.10.0
libtpu: 0.0.40
codegen_flags: <defaults>
</compile_context>

<pallas_src>
import jax
import jax.numpy as jnp
from jax.experimental import pallas as pl
from jax.experimental.pallas import tpu as pltpu

_LANE = 128      # vreg lane width
_SUBLANE = 8     # f32 sublane count


def _round_up(x, m):
    return ((x + m - 1) // m) * m


def _sent_head_kernel(x_ref, w_ref, b_ref, o_ref):
    # x_ref: (TILE_B, H)      activation tile (f32 or bf16)
    # w_ref: (H, C_pad)       pre-transposed weight (matches x dtype)
    # b_ref: (1, C_pad)       bias, f32, lane-padded
    # o_ref: (TILE_B, C_pad)  lane-dense output tile
    acc = jnp.dot(x_ref[...], w_ref[...], preferred_element_type=jnp.float32)
    o_ref[...] = (acc + b_ref[...]).astype(o_ref.dtype)


def bert_sent_head(pooled_output, weight, bias, *, tile_b=1024):
    """seq_relationship_score = pooled_output @ weight.T + bias  (nn.Linear).

    pooled_output: (B, H)  f32 or bf16 (consumed as-is, no wrapper cast)
    weight:        (C, H)  PyTorch nn.Linear layout
    bias:          (C,)
    returns:       (B, C)  in pooled_output.dtype
    """
    B, H = pooled_output.shape
    C, H_w = weight.shape
    assert H == H_w, "weight in_features must match pooled_output hidden size"
    x = pooled_output
    out_dtype = x.dtype

    # Lane-dense output: pad classes up to a single full 128-lane register.
    C_pad = _round_up(C, _LANE)

    # One-time (tiny) wrapper-side weight prep: match x dtype and transpose to
    # (H, C_pad) so the kernel contracts ((1,),(0,)) with no RHS transpose.
    w = jnp.pad(weight.astype(x.dtype).T, ((0, 0), (0, C_pad - C)))
    b2 = jnp.pad(bias.astype(jnp.float32).reshape(1, C),
                 ((0, 0), (0, C_pad - C)))

    # Batch tile: multiple of 8 sublanes, <= tile_b, capped so the x double
    # buffer stays <= 16 MiB (v7x-safe), and small enough that the grid has
    # >= 2 steps whenever B allows it (v7x megacore sharding).
    x_itemsize = jnp.dtype(x.dtype).itemsize
    vmem_cap = max(_SUBLANE,
                   ((16 * 1024 * 1024) // (2 * H * x_itemsize))
                   // _SUBLANE * _SUBLANE)
    two_step = _round_up(pl.cdiv(B, 2), _SUBLANE)
    tile_b_eff = max(_SUBLANE, min(tile_b, vmem_cap, two_step))
    grid_b = pl.cdiv(B, tile_b_eff)

    cost = pl.CostEstimate(
        flops=2 * B * H * C,   # useful work only (not C_pad)
        transcendentals=0,
        bytes_accessed=(x.size * x_itemsize
                        + w.size * jnp.dtype(w.dtype).itemsize
                        + b2.size * 4
                        + B * C_pad * jnp.dtype(out_dtype).itemsize),
    )

    out_pad = pl.pallas_call(
        _sent_head_kernel,
        out_shape=jax.ShapeDtypeStruct((B, C_pad), out_dtype),
        grid=(grid_b,),
        in_specs=[
            pl.BlockSpec((tile_b_eff, H), lambda i: (i, 0)),   # batch-tiled x
            pl.BlockSpec((H, C_pad), lambda i: (0, 0)),        # weight resident
            pl.BlockSpec((1, C_pad), lambda i: (0, 0)),        # bias resident
        ],
        out_specs=pl.BlockSpec((tile_b_eff, C_pad), lambda i: (i, 0)),
        compiler_params=pltpu.CompilerParams(
            dimension_semantics=("parallel",)),
        cost_estimate=cost,
    )(x, w, b2)

    return out_pad[:, :C]


if __name__ == "__main__":
    key = jax.random.PRNGKey(0)

    # --- Small shapes consistent with BertSentHead: batch=2, hidden=32, classes=2
    B, H, C = 2, 32, 2
    k_x, k_w, k_b = jax.random.split(key, 3)
    pooled = jax.random.normal(k_x, (B, H), dtype=jnp.float32)
    weight = jax.random.normal(k_w, (C, H), dtype=jnp.float32) * 0.02
    bias = jax.random.normal(k_b, (C,), dtype=jnp.float32) * 0.02

    ref = jnp.dot(pooled, weight.T, precision=jax.lax.Precision.HIGHEST) + bias
    out = jax.block_until_ready(bert_sent_head(pooled, weight, bias))
    assert out.shape == (B, C)
    assert jnp.allclose(out, ref, atol=1e-5, rtol=1e-5)

    # bf16 activation path: no wrapper-side cast of x; the kernel consumes the
    # bf16 activation directly with f32 accumulation and f32 bias-add.
    pooled_bf16 = pooled.astype(jnp.bfloat16)
    out_bf16 = jax.block_until_ready(bert_sent_head(pooled_bf16, weight, bias))
    ref_bf16 = (jnp.dot(pooled_bf16.astype(jnp.float32), weight.T,
                        precision=jax.lax.Precision.HIGHEST) + bias)
    assert out_bf16.dtype == jnp.bfloat16
    assert jnp.allclose(out_bf16.astype(jnp.float32), ref_bf16,
                        atol=2e-2, rtol=2e-2)

    # --- Larger, non-tile-multiple batch: exercises the >=2-step grid and the
    # pad-free remainder-block masking.
    B2, H2 = 1000, 256
    k_x2, k_w2, k_b2 = jax.random.split(jax.random.PRNGKey(1), 3)
    x2 = jax.random.normal(k_x2, (B2, H2), dtype=jnp.float32)
    w2 = jax.random.normal(k_w2, (C, H2), dtype=jnp.float32) * 0.02
    b2v = jax.random.normal(k_b2, (C,), dtype=jnp.float32) * 0.02
    out2 = jax.block_until_ready(bert_sent_head(x2, w2, b2v))
    ref2 = jnp.dot(x2, w2.T, precision=jax.lax.Precision.HIGHEST) + b2v
    assert out2.shape == (B2, C)
    assert jnp.allclose(out2, ref2, atol=1e-4, rtol=1e-4)

    print("KERNEL_OK")
</pallas_src>

<mosaic_0001>
module attributes {stable_mosaic.version = 11 : i64} {
  func.func @_sent_head_kernel(%arg0: i32, %arg1: memref<8x32xf32, #tpu.memory_space<vmem>>, %arg2: memref<32x128xf32, #tpu.memory_space<vmem>>, %arg3: memref<1x128xf32, #tpu.memory_space<vmem>>, %arg4: memref<8x128xf32, #tpu.memory_space<vmem>>) attributes {dimension_semantics = [#tpu.dimension_semantics<parallel>], iteration_bounds = array<i64: 1>, scalar_prefetch = 0 : i64, scratch_operands = 0 : i64, tpu.core_type = #tpu.core_type<tc>, window_params = [{transform_indices = @transform_0, window_bounds = array<i64: 8, 32>}, {pipeline_mode = #tpu.pipeline_mode<synchronous>, transform_indices = @transform_1, window_bounds = array<i64: 32, 128>}, {pipeline_mode = #tpu.pipeline_mode<synchronous>, transform_indices = @transform_2, window_bounds = array<i64: 1, 128>}, {transform_indices = @transform_3, window_bounds = array<i64: 8, 128>}]} {
    %c0 = arith.constant 0 : index
    %c0_0 = arith.constant 0 : index
    %0 = vector.load %arg1[%c0, %c0_0] : memref<8x32xf32, #tpu.memory_space<vmem>>, vector<8x32xf32>
    %c0_1 = arith.constant 0 : index
    %c0_2 = arith.constant 0 : index
    %1 = vector.load %arg2[%c0_1, %c0_2] : memref<32x128xf32, #tpu.memory_space<vmem>>, vector<32x128xf32>
    %cst = arith.constant dense<0.000000e+00> : vector<8x128xf32>
    %2 = tpu.matmul %0, %1, %cst {dimension_numbers = #tpu.dot_dimension_numbers<[1], [0], [0], [1], [0, 0, 1, 1], [], []>} : vector<8x32xf32>, vector<32x128xf32>, vector<8x128xf32> -> vector<8x128xf32>
    %c0_3 = arith.constant 0 : index
    %c0_4 = arith.constant 0 : index
    %3 = vector.load %arg3[%c0_3, %c0_4] : memref<1x128xf32, #tpu.memory_space<vmem>>, vector<1x128xf32>
    %4 = vector.broadcast %3 : vector<1x128xf32> to vector<8x128xf32>
    %5 = arith.addf %2, %4 : vector<8x128xf32>
    %c0_5 = arith.constant 0 : index
    %c0_6 = arith.constant 0 : index
    %6 = vector.load %arg4[%c0_5, %c0_6] : memref<8x128xf32, #tpu.memory_space<vmem>>, vector<8x128xf32>
    tpu.vector_store %arg4[%c0_5, %c0_6], %5 {strides = array<i32>} : memref<8x128xf32, #tpu.memory_space<vmem>>, vector<8x128xf32>,
    return
  }
  func.func @transform_0(%arg0: i32) -> (i32, i32) {
    %c0_i32 = arith.constant 0 : i32
    %c0_i32_0 = arith.constant 0 : i32
    return %arg0, %c0_i32 : i32, i32
  }
  func.func @transform_1(%arg0: i32) -> (i32, i32) {
    %c0_i32 = arith.constant 0 : i32
    %c0_i32_0 = arith.constant 0 : i32
    %c0_i32_1 = arith.constant 0 : i32
    return %c0_i32, %c0_i32_0 : i32, i32
  }
  func.func @transform_2(%arg0: i32) -> (i32, i32) {
    %c0_i32 = arith.constant 0 : i32
    %c0_i32_0 = arith.constant 0 : i32
    %c0_i32_1 = arith.constant 0 : i32
    return %c0_i32, %c0_i32_0 : i32, i32
  }
  func.func @transform_3(%arg0: i32) -> (i32, i32) {
    %c0_i32 = arith.constant 0 : i32
    %c0_i32_0 = arith.constant 0 : i32
    return %arg0, %c0_i32 : i32, i32
  }
}

</mosaic_0001>

<llo_original>
// kernel: tpu_custom_call.1
$region0: #{tpu_custom_call.1}
  #allocation0 [shape = 'u32[]', space=smem, size = 0x4, offset = 0x4, fixed_abs, tag = 'smem constant byte address 0x4 - core index']
  #allocation1 [shape = 'u32[144,128]{1,0:T(1,128)}', space=vmem, size = 0x12000, scoped, tag = 'internal scratch']
  %s0 = inlined_call_operand.hbm [shape: f32[2,32], index: 0, kind: input, shape index: {}]
  %s1 = inlined_call_operand.hbm [shape: f32[32,128], index: 1, kind: input, shape index: {}]
  %s2 = inlined_call_operand.vmem [shape: f32[1,128], index: 2, kind: input, shape index: {}]
  %s3 = inlined_call_operand.hbm [shape: f32[2,128], index: 3, kind: output, shape index: {}]
  %s4 = sld [smem:[#allocation0]]
  $region30: #{tpu_custom_call.1} parent=0
    _
  %s6 = ssub.s32 1, %s4
  %s7 = scalar_select 0, %s6, %s4
  $region1: #{tpu_custom_call.1} parent=0
    #allocation2 [shape = 'u8[4096]{0}', space=vmem, size = 0x1000, scoped, tag = 'input window, operand 0, single buffered']
    #allocation3 [shape = 's32[1]{0}', space=sflag, size = 0x4, scoped, tag = 'scoped memory for tpu_custom_call.1']
    #allocation4 [shape = 's32[1]{0}', space=sflag, size = 0x4, scoped, tag = 'scoped memory for tpu_custom_call.1']
    #allocation5 [shape = 'u8[16384]{0}', space=vmem, size = 0x4000, scoped, tag = 'input window, operand 1, single buffered']
    #allocation6 [shape = 's32[1]{0}', space=sflag, size = 0x4, scoped, tag = 'scoped memory for tpu_custom_call.1']
    #allocation7 [shape = 'u8[4096]{0}', space=vmem, size = 0x1000, scoped, tag = 'output window, operand 0, single buffered']
    %8 = vsyncpa [#allocation3], 0
    %9 = vsyncpa [#allocation6], 0
    %10 = vsyncpa [#allocation4], 0
    // Predicated region
    $region2: #{tpu_custom_call.1} parent=1 // pred_check
      _
    $region3: #{tpu_custom_call.1} parent=1 // pred_check_branch
      %12 = sbr.rel (0) target = $region5
    $region4: #{tpu_custom_call.1} parent=1 // pred_region
      %s14 = ssub.s32 128, 32
      %15 = vsyncadd [#allocation3], %s14
      %s16 = sshll.u32 [#allocation2], 4
      %s17 = int_to_ptr.vmem [resolvable:$true] %s16
      %22 = dma.hbm_to_vmem [thread:$0]  %s0, 32, %s17, [#allocation3], 32, 32, 2
    $region5: #{tpu_custom_call.1} parent=1 // pred_fallthru
      _
    // Predicated region
    $region6: #{tpu_custom_call.1} parent=1 // pred_check
      _
    $region7: #{tpu_custom_call.1} parent=1 // pred_check_branch
      %24 = sbr.rel (0) target = $region9
    $region8: #{tpu_custom_call.1} parent=1 // pred_region
      %s26 = ssub.s32 512, 512
      %27 = vsyncadd [#allocation6], %s26
      %s28 = sshll.u32 [#allocation5], 4
      %s29 = int_to_ptr.vmem [resolvable:$true] %s28
      %34 = dma.hbm_to_vmem [thread:$0]  %s1, 512, %s29, [#allocation6], 128, 128, 8
    $region9: #{tpu_custom_call.1} parent=1 // pred_fallthru
      _
    // Predicated region
    $region10: #{tpu_custom_call.1} parent=1 // pred_check
      _
    $region11: #{tpu_custom_call.1} parent=1 // pred_check_branch
      %36 = sbr.rel (0) target = $region13
    $region12: #{tpu_custom_call.1} parent=1 // pred_region
      _
    $region13: #{tpu_custom_call.1} parent=1 // pred_fallthru
      _
    // Predicated region
    $region14: #{tpu_custom_call.1} parent=1 // pred_check
      _
    $region15: #{tpu_custom_call.1} parent=1 // pred_check_branch
      %38 = sbr.rel (0) target = $region17
    $region16: #{tpu_custom_call.1} parent=1 // pred_region
      %39 = dma.done [#allocation3], 128
    $region17: #{tpu_custom_call.1} parent=1 // pred_fallthru
      _
    // Predicated region
    $region18: #{tpu_custom_call.1} parent=1 // pred_check
      _
    $region19: #{tpu_custom_call.1} parent=1 // pred_check_branch
      %41 = sbr.rel (0) target = $region21
    $region20: #{tpu_custom_call.1} parent=1 // pred_region
      %42 = dma.done [#allocation6], 512
    $region21: #{tpu_custom_call.1} parent=1 // pred_fallthru
      _
    %v43 = vld [vmem:[#allocation2] sm:$0xff]
    %v44 = vld [vmem:[#allocation5] sm:$0xff]
    %v45 = vld [vmem:[#allocation5 + $0x8] sm:$0xff]
    %v46 = vld [vmem:[#allocation5 + $0x10] sm:$0xff]
    %v47 = vld [vmem:[#allocation5 + $0x18] sm:$0xff]
    %v48 = vld [vmem:[%s2] sm:$0x1]
    %v50 = vlaneseq
    %v51 = vshrl.u32 %v50, 7
    %v52 = vsub.s32 0, %v51
    %v53 = vrot.slane %v48, %v52
    %vm55 = vcmask 261120
    %v57 = vsel %vm55, %v43, 0
    %59 = vmatprep.subr.mxu0 0.0
    %60 = vmatpush1.msra.mxu0 %v44
    %61 = vmatprep.subr.mxu0 0.0
    %62 = vmatpush1.msra.mxu0 %v45
    %63 = vmatprep.subr.mxu0 0.0
    %64 = vmatpush1.msra.mxu0 %v46
    %65 = vmatprep.subr.mxu0 0.0
    %66 = vmatpush1.msra.mxu0 %v47
    %67 = vmatprep.subr.mxu0 0.0
    %68 = vmatpush1.msra.mxu0 0.0
    %69 = vmatprep.subr.mxu0 0.0
    %70 = vmatpush1.msra.mxu0 0.0
    %71 = vmatprep.subr.mxu0 0.0
    %72 = vmatpush1.msra.mxu0 0.0
    %73 = vmatprep.subr.mxu0 0.0
    %74 = vmatpush1.msra.mxu0 0.0
    %75 = vmatprep.subr.mxu0 0.0
    %76 = vmatpush1.msra.mxu0 0.0
    %77 = vmatprep.subr.mxu0 0.0
    %78 = vmatpush1.msra.mxu0 0.0
    %79 = vmatprep.subr.mxu0 0.0
    %80 = vmatpush1.msra.mxu0 0.0
    %81 = vmatprep.subr.mxu0 0.0
    %82 = vmatpush1.msra.mxu0 0.0
    %83 = vmatprep.subr.mxu0 0.0
    %84 = vmatpush1.msra.mxu0 0.0
    %85 = vmatprep.subr.mxu0 0.0
    %86 = vmatpush1.msra.mxu0 0.0
    %87 = vmatprep.subr.mxu0 0.0
    %88 = vmatpush1.msra.mxu0 0.0
    %89 = vmatprep.subr.mxu0 0.0
    %90 = vmatpush1.msra.mxu0 0.0
    %91 = vmatprep.subr.mxu0 0.0
    %92 = vmatpush1.msra.mxu0 0.0
    %93 = vmatprep.subr.mxu0 0.0
    %94 = vmatpush1.msra.mxu0 0.0
    %95 = vmatprep.subr.mxu0 0.0
    %96 = vmatpush1.msra.mxu0 0.0
    %97 = vmatprep.subr.mxu0 0.0
    %98 = vmatpush1.msra.mxu0 0.0
    %99 = vmatprep.subr.mxu0 0.0
    %100 = vmatpush1.msra.mxu0 0.0
    %101 = vmatprep.subr.mxu0 0.0
    %102 = vmatpush1.msra.mxu0 0.0
    %103 = vmatprep.subr.mxu0 0.0
    %104 = vmatpush1.msra.mxu0 0.0
    %105 = vmatprep.subr.mxu0 0.0
    %106 = vmatpush1.msra.mxu0 0.0
    %107 = vmatprep.subr.mxu0 0.0
    %108 = vmatpush1.msra.mxu0 0.0
    %109 = vmatprep.subr.mxu0 0.0
    %110 = vmatpush1.msra.mxu0 0.0
    %111 = vmatprep.subr.mxu0 0.0
    %112 = vmatpush1.msra.mxu0 0.0
    %113 = vmatprep.subr.mxu0 0.0
    %114 = vmatpush1.msra.mxu0 0.0
    %115 = vmatprep.subr.mxu0 0.0
    %116 = vmatpush1.msra.mxu0 0.0
    %117 = vmatprep.subr.mxu0 0.0
    %118 = vmatpush1.msra.mxu0 0.0
    %119 = vmatprep.subr.mxu0 0.0
    %120 = vmatpush1.msra.mxu0 0.0
    %121 = vmatprep.subr.mxu0 0.0
    %122 = vmatpush1.msra.mxu0 0.0
    %123 = vmatprep.mubr.f32.mxu0 0.0
    %124 = vmatmul.mubr.f32.gmra.mrb[0].mxu0 %v57
    %v125 = vpop.f32.mrb[0].mxu0
    %v126 = vadd.f32 %v53, %v125
    %v127 = vpop.f32.mrb[0].mxu0
    %128 = vdwg.mxu0
    %129 = vst [vmem:[#allocation7] sm:$0xff] %v126
    // Predicated region
    $region22: #{tpu_custom_call.1} parent=1 // pred_check
      _
    $region23: #{tpu_custom_call.1} parent=1 // pred_check_branch
      %131 = sbr.rel (0) target = $region25
    $region24: #{tpu_custom_call.1} parent=1 // pred_region
      %s133 = ssub.s32 128, 32
      %134 = vsyncadd [#allocation4], %s133
      %s135 = sshll.u32 [#allocation7], 4
      %s136 = int_to_ptr.vmem [resolvable:$true] %s135
      %141 = dma.vmem_to_hbm [thread:$0]  %s136, 32, %s3, [#allocation4], 32, 32, 2
    $region25: #{tpu_custom_call.1} parent=1 // pred_fallthru
      _
    // Predicated region
    $region26: #{tpu_custom_call.1} parent=1 // pred_check
      _
    $region27: #{tpu_custom_call.1} parent=1 // pred_check_branch
      %143 = sbr.rel (0) target = $region29
    $region28: #{tpu_custom_call.1} parent=1 // pred_region
      %144 = dma.done [#allocation4], 128
    $region29: #{tpu_custom_call.1} parent=1 // pred_fallthru
      _
    %145 = vsyncpa [#allocation3], 1
    %146 = vsyncpa [#allocation6], 1
    %147 = vsyncpa [#allocation4], 1

</llo_original>
